<compile_context>
chip_gen: v7x
topology: tpu7x:2x2x1
jax: 0.10.0
libtpu: 0.0.40
codegen_flags: <defaults>
</compile_context>

<pallas_src>
import functools

import jax
import jax.numpy as jnp
from jax.experimental import pallas as pl
from jax.experimental.pallas import tpu as pltpu

LANES = 128
SUBLANES = 8


def _mse_sum_kernel(x_ref, t_ref, psum_ref, acc_ref, *, total_rows, masked):
    """Running sum of (x - t)^2 into a (8, 128) f32 accumulator; scalar out."""
    i = pl.program_id(0)
    n_blocks = pl.num_programs(0)

    @pl.when(i == 0)
    def _init():
        acc_ref[...] = jnp.zeros_like(acc_ref)

    d = x_ref[...].astype(jnp.float32) - t_ref[...].astype(jnp.float32)
    d2 = d * d
    # Fold the (tile_rows, 128) block into one (8, 128) vreg-sized partial sum.
    # The reshape splits the sublane axis (no relayout); the axis-0 sum is an
    # elementwise add chain on the VPU.  acc_ref sees exactly one load and one
    # store per grid step regardless of tile_rows.
    folded = jnp.sum(d2.reshape(-1, SUBLANES, LANES), axis=0)

    if masked:
        # Only the final (ragged) block needs the row mask; keep the hot path
        # free of iota/compare/select.
        @pl.when(i < n_blocks - 1)
        def _full_block():
            acc_ref[...] += folded

        @pl.when(i == n_blocks - 1)
        def _ragged_block():
            tile_rows = x_ref.shape[0]
            row_ids = i * tile_rows + jax.lax.broadcasted_iota(
                jnp.int32, d2.shape, 0
            )
            # Rows >= total_rows are the OOB-padded tail of the last block:
            # jnp.where is a select, so garbage/NaN there is harmless.
            tail_d2 = jnp.where(row_ids < total_rows, d2, jnp.float32(0.0))
            acc_ref[...] += jnp.sum(tail_d2.reshape(-1, SUBLANES, LANES), axis=0)
    else:
        acc_ref[...] += folded

    @pl.when(i == n_blocks - 1)
    def _finalize():
        # Single cross-lane/sublane reduce, once per kernel invocation.
        psum_ref[0, 0] = jnp.sum(acc_ref[...])


def _mse_sum_main(x2d, t2d, *, target_block_bytes):
    """Returns sum((x2d - t2d)^2) over the full (rows, 128) slab via Pallas."""
    rows = x2d.shape[0]
    itemsize = jnp.dtype(x2d.dtype).itemsize
    # Sublane packing of the native dtype (f32 -> 8, bf16 -> 16, int8/fp8 -> 32).
    sublane_multiple = SUBLANES * max(1, 4 // max(1, itemsize))

    # Dtype-aware tile: hold the per-block BYTE size constant (~target_block_bytes)
    # so narrow dtypes stream blocks just as large as f32 does.
    target_rows = max(sublane_multiple, target_block_bytes // (LANES * itemsize))
    tile_rows = (min(target_rows, rows) // sublane_multiple) * sublane_multiple
    tile_rows = max(sublane_multiple, tile_rows)

    n_blocks = pl.cdiv(rows, tile_rows)
    masked = rows % tile_rows != 0

    kernel = functools.partial(_mse_sum_kernel, total_rows=rows, masked=masked)

    psum = pl.pallas_call(
        kernel,
        out_shape=jax.ShapeDtypeStruct((1, 1), jnp.float32),
        grid_spec=pltpu.PrefetchScalarGridSpec(
            num_scalar_prefetch=0,
            grid=(n_blocks,),
            in_specs=[
                pl.BlockSpec((tile_rows, LANES), lambda i: (i, 0)),
                pl.BlockSpec((tile_rows, LANES), lambda i: (i, 0)),
            ],
            out_specs=pl.BlockSpec(
                (1, 1), lambda i: (0, 0), memory_space=pltpu.SMEM
            ),
            scratch_shapes=[pltpu.VMEM((SUBLANES, LANES), jnp.float32)],
        ),
        compiler_params=pltpu.CompilerParams(
            dimension_semantics=("arbitrary",),
            # Bigger tiles would exceed v5e's 16 MiB scoped-VMEM default; 32 MiB
            # is safe on every generation (v7x default is already 32 MiB).
            vmem_limit_bytes=32 * 1024 * 1024,
        ),
        # Advisory hint for XLA: known mem-bound streaming reduction.
        cost_estimate=pl.CostEstimate(
            flops=3 * rows * LANES,
            transcendentals=0,
            bytes_accessed=2 * rows * LANES * itemsize + 4,
        ),
    )(x2d, t2d)

    return psum[0, 0]


@functools.partial(jax.jit, static_argnames=("target_block_bytes",))
def content_loss_forward(x, target, target_block_bytes=2 * 1024 * 1024):
    """Pallas equivalent of ContentLoss.forward: returns (input, mse_loss)."""
    assert x.shape == target.shape, "mse_loss here requires matching shapes"
    numel = x.size

    # No dtype cast in the wrapper: inputs stream at native width.
    flat_x = x.reshape(-1)
    flat_t = target.reshape(-1)

    rows = numel // LANES
    itemsize = jnp.dtype(x.dtype).itemsize
    sublane_multiple = SUBLANES * max(1, 4 // max(1, itemsize))

    if rows < sublane_multiple:
        # Degenerate tiny input: not worth a kernel launch.
        d = flat_x.astype(jnp.float32) - flat_t.astype(jnp.float32)
        return x, jnp.sum(d * d) / jnp.float32(numel)

    main = rows * LANES
    if main != numel:
        # Sub-128-element tail handled in plain JAX.
        # TODO(synk): the flat_x[:main] prefix slice feeding pallas_call may
        # materialize a near-full-tensor HBM copy for non-128-aligned numel
        # (custom-call operands don't fuse producers); audit the HLO and, if a
        # copy appears, switch to allow_input_fusion or an in-kernel tail path.
        rx = flat_x[main:].astype(jnp.float32)
        rt = flat_t[main:].astype(jnp.float32)
        tail_sum = jnp.sum((rx - rt) ** 2)
        x2d = flat_x[:main].reshape(rows, LANES)
        t2d = flat_t[:main].reshape(rows, LANES)
    else:
        tail_sum = jnp.float32(0.0)
        x2d = flat_x.reshape(rows, LANES)
        t2d = flat_t.reshape(rows, LANES)

    main_sum = _mse_sum_main(x2d, t2d, target_block_bytes=target_block_bytes)
    loss = (main_sum + tail_sum) / jnp.float32(numel)

    # ContentLoss.forward returns its input unchanged; the loss is returned as a
    # second output instead of being stashed on the module.
    return x, loss


def _ref_loss(x, t):
    return jnp.mean((x.astype(jnp.float32) - t.astype(jnp.float32)) ** 2)


if __name__ == "__main__":
    key = jax.random.PRNGKey(0)
    k1, k2, k3, k4, k5, k6 = jax.random.split(key, 6)

    # Case 1: NCHW feature map, f32, evenly tiled.
    x1 = jax.random.normal(k1, (2, 4, 16, 16), dtype=jnp.float32)
    t1 = jax.random.normal(k2, (2, 4, 16, 16), dtype=jnp.float32)
    out1, loss1 = content_loss_forward(x1, t1)
    jax.block_until_ready((out1, loss1))
    assert jnp.allclose(loss1, _ref_loss(x1, t1), rtol=1e-5, atol=1e-6), (
        loss1, _ref_loss(x1, t1))
    assert jnp.array_equal(out1, x1)  # pass-through identity

    # Case 2: ragged size (exercises the gated last-block mask + plain-JAX tail).
    x2 = jax.random.normal(k3, (1, 3, 24, 24), dtype=jnp.float32)
    t2 = jax.random.normal(k4, (1, 3, 24, 24), dtype=jnp.float32)
    out2, loss2 = content_loss_forward(x2, t2)
    jax.block_until_ready((out2, loss2))
    assert jnp.allclose(loss2, _ref_loss(x2, t2), rtol=1e-5, atol=1e-6), (
        loss2, _ref_loss(x2, t2))
    assert jnp.array_equal(out2, x2)

    # Case 3: bf16 inputs streamed at native width, upcast in-register (f32 accum).
    x3 = jax.random.normal(k5, (2, 4, 16, 16), dtype=jnp.bfloat16)
    t3 = jax.random.normal(k6, (2, 4, 16, 16), dtype=jnp.bfloat16)
    out3, loss3 = content_loss_forward(x3, t3)
    jax.block_until_ready((out3, loss3))
    assert jnp.allclose(loss3, _ref_loss(x3, t3), rtol=1e-4, atol=1e-6), (
        loss3, _ref_loss(x3, t3))
    assert jnp.array_equal(out3, x3)

    print("KERNEL_OK")
</pallas_src>

<mosaic_0001>
module attributes {stable_mosaic.version = 11 : i64} {
  func.func @_mse_sum_kernel(%arg0: i32, %arg1: memref<16x128xf32, #tpu.memory_space<vmem>>, %arg2: memref<16x128xf32, #tpu.memory_space<vmem>>, %arg3: memref<1x1xf32, #tpu.memory_space<smem>>, %arg4: memref<8x128xf32, #tpu.memory_space<vmem>>) attributes {dimension_semantics = [#tpu.dimension_semantics<arbitrary>], iteration_bounds = array<i64: 1>, scalar_prefetch = 0 : i64, scratch_operands = 1 : i64, tpu.core_type = #tpu.core_type<tc>, window_params = [{transform_indices = @transform_0, window_bounds = array<i64: 16, 128>}, {transform_indices = @transform_1, window_bounds = array<i64: 16, 128>}, {transform_indices = @transform_2, window_bounds = array<i64: 1, 1>}]} {
    %c0_i32 = arith.constant 0 : i32
    %0 = arith.cmpi eq, %arg0, %c0_i32 : i32
    %1 = arith.extui %0 : i1 to i32
    %c0_i32_0 = arith.constant 0 : i32
    %2 = arith.cmpi ne, %1, %c0_i32_0 : i32
    scf.if %2 {
      %cst_10 = arith.constant 0.000000e+00 : f32
      %15 = vector.broadcast %cst_10 : f32 to vector<8x128xf32>
      %c0_11 = arith.constant 0 : index
      %c0_12 = arith.constant 0 : index
      %16 = vector.load %arg4[%c0_11, %c0_12] : memref<8x128xf32, #tpu.memory_space<vmem>>, vector<8x128xf32>
      tpu.vector_store %arg4[%c0_11, %c0_12], %15 {strides = array<i32>} : memref<8x128xf32, #tpu.memory_space<vmem>>, vector<8x128xf32>,
    } else {
    }
    %c0 = arith.constant 0 : index
    %c0_1 = arith.constant 0 : index
    %3 = vector.load %arg1[%c0, %c0_1] : memref<16x128xf32, #tpu.memory_space<vmem>>, vector<16x128xf32>
    %c0_2 = arith.constant 0 : index
    %c0_3 = arith.constant 0 : index
    %4 = vector.load %arg2[%c0_2, %c0_3] : memref<16x128xf32, #tpu.memory_space<vmem>>, vector<16x128xf32>
    %5 = arith.subf %3, %4 : vector<16x128xf32>
    %6 = arith.mulf %5, %5 : vector<16x128xf32>
    %7 = vector.shape_cast %6 : vector<16x128xf32> to vector<2x8x128xf32>
    %cst = arith.constant dense<0.000000e+00> : vector<8x128xf32>
    %8 = vector.multi_reduction <add>, %7, %cst [0] : vector<2x8x128xf32> to vector<8x128xf32>
    %c0_4 = arith.constant 0 : index
    %c0_5 = arith.constant 0 : index
    %9 = vector.load %arg4[%c0_4, %c0_5] : memref<8x128xf32, #tpu.memory_space<vmem>>, vector<8x128xf32>
    %10 = arith.addf %9, %8 : vector<8x128xf32>
    %c0_6 = arith.constant 0 : index
    %c0_7 = arith.constant 0 : index
    %11 = vector.load %arg4[%c0_6, %c0_7] : memref<8x128xf32, #tpu.memory_space<vmem>>, vector<8x128xf32>
    tpu.vector_store %arg4[%c0_6, %c0_7], %10 {strides = array<i32>} : memref<8x128xf32, #tpu.memory_space<vmem>>, vector<8x128xf32>,
    %c0_i32_8 = arith.constant 0 : i32
    %12 = arith.cmpi eq, %arg0, %c0_i32_8 : i32
    %13 = arith.extui %12 : i1 to i32
    %c0_i32_9 = arith.constant 0 : i32
    %14 = arith.cmpi ne, %13, %c0_i32_9 : i32
    scf.if %14 {
      %c0_10 = arith.constant 0 : index
      %c0_11 = arith.constant 0 : index
      %15 = vector.load %arg4[%c0_10, %c0_11] : memref<8x128xf32, #tpu.memory_space<vmem>>, vector<8x128xf32>
      %16 = vector.shape_cast %15 : vector<8x128xf32> to vector<1x8x128xf32>
      %cst_12 = arith.constant dense<0.000000e+00> : vector<1xf32>
      %17 = vector.multi_reduction <add>, %16, %cst_12 [1, 2] : vector<1x8x128xf32> to vector<1xf32>
      %18 = vector.shape_cast %17 : vector<1xf32> to vector<1x1x1xf32>
      %19 = vector.extract %18[0, 0, 0] : f32 from vector<1x1x1xf32>
      %c0_13 = arith.constant 0 : index
      %c0_14 = arith.constant 0 : index
      %20 = memref.load %arg3[%c0_13, %c0_14] : memref<1x1xf32, #tpu.memory_space<smem>>
      memref.store %19, %arg3[%c0_13, %c0_14] : memref<1x1xf32, #tpu.memory_space<smem>>
    } else {
    }
    return
  }
  func.func @transform_0(%arg0: i32) -> (i32, i32) {
    %c0_i32 = arith.constant 0 : i32
    %c0_i32_0 = arith.constant 0 : i32
    return %arg0, %c0_i32 : i32, i32
  }
  func.func @transform_1(%arg0: i32) -> (i32, i32) {
    %c0_i32 = arith.constant 0 : i32
    %c0_i32_0 = arith.constant 0 : i32
    return %arg0, %c0_i32 : i32, i32
  }
  func.func @transform_2(%arg0: i32) -> (i32, i32) {
    %c0_i32 = arith.constant 0 : i32
    %c0_i32_0 = arith.constant 0 : i32
    %c0_i32_1 = arith.constant 0 : i32
    return %c0_i32, %c0_i32_0 : i32, i32
  }
}

</mosaic_0001>

<llo_original>
// kernel: content_loss_forward.1
$region0: #{content_loss_forward.1}
  #allocation0 [shape = 'u32[]', space=smem, size = 0x4, offset = 0x4, fixed_abs, tag = 'smem constant byte address 0x4 - core index']
  #allocation1 [shape = 'u32[144,128]{1,0:T(1,128)}', space=vmem, size = 0x12000, scoped, tag = 'internal scratch']
  #allocation2 [shape = 'f32[8,128]{1,0:T(8,128)}', space=vmem, size = 0x1000, scoped, tag = 'scratch operand']
  %s0 = inlined_call_operand.vmem [shape: f32[16,128], index: 0, kind: input, shape index: {}]
  %s1 = inlined_call_operand.vmem [shape: f32[16,128], index: 1, kind: input, shape index: {}]
  %s2 = inlined_call_operand.hbm [shape: f32[1,1], index: 2, kind: output, shape index: {}]
  %s3 = sld [smem:[#allocation0]]
  $region26: #{content_loss_forward.1} parent=0
    _
  %s5 = ssub.s32 1, %s3
  %s6 = scalar_select 0, %s5, %s3
  $region1: #{content_loss_forward.1} parent=0
    #allocation3 [shape = 'u8[512]{0}', space=smem, size = 0x200, scoped, tag = 'output window, operand 0, single buffered']
    #allocation4 [shape = 's32[1]{0}', space=sflag, size = 0x4, scoped, tag = 'scoped memory for content_loss_forward.1']
    %7 = vsyncpa [#allocation4], 0
    // Predicated region
    $region2: #{content_loss_forward.1} parent=1 // pred_check
      _
    $region3: #{content_loss_forward.1} parent=1 // pred_check_branch
      %9 = sbr.rel (0) target = $region5
    $region4: #{content_loss_forward.1} parent=1 // pred_region
      _
    $region5: #{content_loss_forward.1} parent=1 // pred_fallthru
      _
    // Predicated region
    $region6: #{content_loss_forward.1} parent=1 // pred_check
      _
    $region7: #{content_loss_forward.1} parent=1 // pred_check_branch
      %11 = sbr.rel (0) target = $region9
    $region8: #{content_loss_forward.1} parent=1 // pred_region
      _
    $region9: #{content_loss_forward.1} parent=1 // pred_fallthru
      _
    %p12 = scmp.eq.s32.totalorder 0, 0
    // Predicated region
    $region10: #{content_loss_forward.1} parent=1 // pred_check
      %p13 = pneg %p12
    $region11: #{content_loss_forward.1} parent=1 // pred_check_branch
      %15 = sbr.rel (%p13) target = $region13
    $region12: #{content_loss_forward.1} parent=1 // pred_region
      %16 = vst [vmem:[#allocation2] sm:$0xff] 0.0
    $region13: #{content_loss_forward.1} parent=1 // pred_fallthru
      _
    %v17 = vld [vmem:[%s0] sm:$0xff]
    %v18 = vld [vmem:[%s0 + $0x8] sm:$0xff]
    %v19 = vld [vmem:[%s1] sm:$0xff]
    %v20 = vld [vmem:[%s1 + $0x8] sm:$0xff]
    %v21 = vsub.f32 %v17, %v19
    %v22 = vsub.f32 %v18, %v20
    %v23 = vmul.f32 %v21, %v21
    %v24 = vmul.f32 %v22, %v22
    %v25 = vadd.f32 %v23, %v24
    %v26 = vld [vmem:[#allocation2] sm:$0xff]
    %v27 = vadd.f32 %v26, %v25
    %28 = vst [vmem:[#allocation2] sm:$0xff] %v27
    // Predicated region
    $region14: #{content_loss_forward.1} parent=1 // pred_check
      %p29 = pneg %p12
    $region15: #{content_loss_forward.1} parent=1 // pred_check_branch
      %31 = sbr.rel (%p29) target = $region17
    $region16: #{content_loss_forward.1} parent=1 // pred_region
      %v32 = vld [vmem:[#allocation2] sm:$0xff]
      %33 = vadd.xlane.f32.xlu0 %v32
      %v34 = vpop.xlane.xlu0 %33
      %v35 = vrot.slane %v34, 4
      %v36 = vadd.f32 %v34, %v35
      %v37 = vrot.slane %v36, 2
      %v38 = vadd.f32 %v36, %v37
      %v39 = vrot.slane %v38, 1
      %v40 = vadd.f32 %v38, %v39
      %s41 = vtos %v40
      %s42 = scalar_lea.smem [#allocation3], 0
      %43 = sst [smem:[%s42]] %s41
    $region17: #{content_loss_forward.1} parent=1 // pred_fallthru
      _
    // Predicated region
    $region18: #{content_loss_forward.1} parent=1 // pred_check
      _
    $region19: #{content_loss_forward.1} parent=1 // pred_check_branch
      %45 = sbr.rel (0) target = $region21
    $region20: #{content_loss_forward.1} parent=1 // pred_region
      %s47 = ssub.s32 16, 16
      %48 = vsyncadd [#allocation4], %s47
      %51 = dma.smem_to_hbm [#allocation3], 16, %s2, [#allocation4]
    $region21: #{content_loss_forward.1} parent=1 // pred_fallthru
      _
    // Predicated region
    $region22: #{content_loss_forward.1} parent=1 // pred_check
      _
    $region23: #{content_loss_forward.1} parent=1 // pred_check_branch
      %53 = sbr.rel (0) target = $region25
    $region24: #{content_loss_forward.1} parent=1 // pred_region
      %54 = dma.done [#allocation4], 16
    $region25: #{content_loss_forward.1} parent=1 // pred_fallthru
      _
    %55 = sfence
    %56 = vsyncpa [#allocation4], 1

</llo_original>
